<compile_context>
chip_gen: v6e
topology: v6e:2x2x1
jax: 0.10.0
libtpu: 0.0.40
codegen_flags: <defaults>
</compile_context>

<pallas_src>
import functools

import jax
import jax.numpy as jnp
from jax.experimental import pallas as pl
from jax.experimental.pallas import tpu as pltpu

_LANES = 128
_SUBLANES = 8


def _round_up(n, m):
    return ((n + m - 1) // m) * m


def _pad2d(a, rows, cols):
    return jnp.pad(a, ((0, rows - a.shape[0]), (0, cols - a.shape[1])))


def _autoencoder_kernel(
    x_ref,
    w1_ref, b1_ref, w2_ref, b2_ref, w3_ref, b3_ref,   # encoder
    w4_ref, b4_ref, w5_ref, b5_ref, w6_ref, b6_ref,   # decoder
    enc_ref, dec_ref,
):
    x = x_ref[...]  # already f32; no redundant cast

    # ---- encoder ----
    h = jnp.dot(x, w1_ref[...], preferred_element_type=jnp.float32) + b1_ref[...]
    h = jnp.maximum(h, 0.0)
    h = jnp.dot(h, w2_ref[...], preferred_element_type=jnp.float32) + b2_ref[...]
    h = jnp.maximum(h, 0.0)
    enc = jnp.dot(h, w3_ref[...], preferred_element_type=jnp.float32) + b3_ref[...]
    enc_ref[...] = enc.astype(enc_ref.dtype)

    # ---- decoder ----
    h = jnp.dot(enc, w4_ref[...], preferred_element_type=jnp.float32) + b4_ref[...]
    h = jnp.maximum(h, 0.0)
    h = jnp.dot(h, w5_ref[...], preferred_element_type=jnp.float32) + b5_ref[...]
    h = jnp.maximum(h, 0.0)
    dec = jnp.dot(h, w6_ref[...], preferred_element_type=jnp.float32) + b6_ref[...]
    dec_ref[...] = dec.astype(dec_ref.dtype)


@functools.partial(jax.jit, static_argnames=("ndim", "outdim", "hid1", "hid2"))
def autoencoder_forward(x, params, *, ndim, outdim, hid1, hid2):
    """x: (B, ndim) f32. params: flat tuple of (w, b) for the 6 Linear layers
    with weights stored as (in, out) and biases as (1, out)."""
    B = x.shape[0]

    # Lane-aligned (padded) feature dims.
    ndim_p = _round_up(ndim, _LANES)
    out_p = _round_up(outdim, _LANES)
    h1_p = _round_up(hid1, _LANES)
    h2_p = _round_up(hid2, _LANES)

    # Batch tile: 512 rows when the batch is large enough, otherwise the batch
    # rounded up to a sublane multiple.  Batch itself is padded to a tile multiple.
    TB = min(512, _round_up(B, _SUBLANES))
    Bp = _round_up(B, TB)
    grid = (Bp // TB,)

    x_p = _pad2d(x.astype(jnp.float32), Bp, ndim_p)

    w1, b1, w2, b2, w3, b3, w4, b4, w5, b5, w6, b6 = params
    padded_params = (
        _pad2d(w1, ndim_p, h1_p), _pad2d(b1, 1, h1_p),
        _pad2d(w2, h1_p, h2_p),   _pad2d(b2, 1, h2_p),
        _pad2d(w3, h2_p, out_p),  _pad2d(b3, 1, out_p),
        _pad2d(w4, out_p, h2_p),  _pad2d(b4, 1, h2_p),
        _pad2d(w5, h2_p, h1_p),   _pad2d(b5, 1, h1_p),
        _pad2d(w6, h1_p, ndim_p), _pad2d(b6, 1, ndim_p),
    )

    def row_spec(cols):
        # Streamed per-grid-step tile over the batch dimension.
        return pl.BlockSpec((TB, cols), lambda i: (i, 0))

    def resident_spec(shape):
        # Grid-invariant block index -> weights/biases stay resident in VMEM.
        return pl.BlockSpec(shape, lambda i: (0, 0))

    in_specs = [row_spec(ndim_p)] + [resident_spec(p.shape) for p in padded_params]
    out_specs = (row_spec(out_p), row_spec(ndim_p))
    out_shape = (
        jax.ShapeDtypeStruct((Bp, out_p), jnp.float32),
        jax.ShapeDtypeStruct((Bp, ndim_p), jnp.float32),
    )

    # Explicit VMEM budget: 2 pipeline buffers x (x + enc + dec tiles) + resident
    # params (+ headroom).  Stays well inside v7x's 64 MiB physical VMEM.
    tile_bytes = TB * 4 * (ndim_p + out_p + ndim_p)
    param_bytes = sum(int(p.size) * p.dtype.itemsize for p in padded_params)
    vmem_bytes = 2 * tile_bytes + 2 * param_bytes + (2 << 20)
    vmem_bytes = int(min(max(vmem_bytes, 16 << 20), 96 << 20))

    enc_p, dec_p = pl.pallas_call(
        _autoencoder_kernel,
        out_shape=out_shape,
        grid=grid,
        in_specs=in_specs,
        out_specs=out_specs,
        compiler_params=pltpu.CompilerParams(
            dimension_semantics=("parallel",),
            vmem_limit_bytes=vmem_bytes,
        ),
    )(x_p, *padded_params)

    # Slice back to logical shapes (drop batch + lane padding).
    return enc_p[:B, :outdim], dec_p[:B, :ndim]


def init_params(key, ndim, outdim, hid1, hid2):
    """Deterministic init matching nn.Linear shapes (stored transposed: (in, out)).
    Biases kept 2D (1, out) for TPU lane layout; broadcasting matches PyTorch."""
    sizes = [
        (ndim, hid1), (hid1, hid2), (hid2, outdim),   # encoder
        (outdim, hid2), (hid2, hid1), (hid1, ndim),   # decoder
    ]
    params = []
    for (fan_in, fan_out) in sizes:
        key, kw, kb = jax.random.split(key, 3)
        bound = 1.0 / jnp.sqrt(fan_in)
        w = jax.random.uniform(kw, (fan_in, fan_out), jnp.float32, -bound, bound)
        b = jax.random.uniform(kb, (1, fan_out), jnp.float32, -bound, bound)
        params += [w, b]
    return tuple(params)


def reference_forward(x, params):
    """Pure-JAX reference mirroring the PyTorch module."""
    w1, b1, w2, b2, w3, b3, w4, b4, w5, b5, w6, b6 = params
    h = jnp.maximum(x @ w1 + b1, 0.0)
    h = jnp.maximum(h @ w2 + b2, 0.0)
    enc = h @ w3 + b3
    h = jnp.maximum(enc @ w4 + b4, 0.0)
    h = jnp.maximum(h @ w5 + b5, 0.0)
    dec = h @ w6 + b6
    return enc, dec


if __name__ == "__main__":
    # Small shapes consistent with the module: AutoEncoder(ndim=64, outdim=16, hid1=32, hid2=24)
    ndim, outdim, hid1, hid2 = 64, 16, 32, 24
    batch = 8

    key = jax.random.PRNGKey(0)
    key, kx = jax.random.split(key)
    x = jax.random.normal(kx, (batch, ndim), jnp.float32)
    params = init_params(key, ndim, outdim, hid1, hid2)

    enc, dec = autoencoder_forward(x, params, ndim=ndim, outdim=outdim,
                                   hid1=hid1, hid2=hid2)
    enc, dec = jax.block_until_ready((enc, dec))

    enc_ref, dec_ref = reference_forward(x, params)
    assert enc.shape == (batch, outdim) and dec.shape == (batch, ndim)
    assert jnp.allclose(enc, enc_ref, atol=2e-5, rtol=1e-5)
    assert jnp.allclose(dec, dec_ref, atol=2e-5, rtol=1e-5)

    print("KERNEL_OK")
</pallas_src>

<mosaic_0001>
module attributes {stable_mosaic.version = 11 : i64} {
  func.func @_autoencoder_kernel(%arg0: i32, %arg1: memref<8x128xf32, #tpu.memory_space<vmem>>, %arg2: memref<128x128xf32, #tpu.memory_space<vmem>>, %arg3: memref<1x128xf32, #tpu.memory_space<vmem>>, %arg4: memref<128x128xf32, #tpu.memory_space<vmem>>, %arg5: memref<1x128xf32, #tpu.memory_space<vmem>>, %arg6: memref<128x128xf32, #tpu.memory_space<vmem>>, %arg7: memref<1x128xf32, #tpu.memory_space<vmem>>, %arg8: memref<128x128xf32, #tpu.memory_space<vmem>>, %arg9: memref<1x128xf32, #tpu.memory_space<vmem>>, %arg10: memref<128x128xf32, #tpu.memory_space<vmem>>, %arg11: memref<1x128xf32, #tpu.memory_space<vmem>>, %arg12: memref<128x128xf32, #tpu.memory_space<vmem>>, %arg13: memref<1x128xf32, #tpu.memory_space<vmem>>, %arg14: memref<8x128xf32, #tpu.memory_space<vmem>>, %arg15: memref<8x128xf32, #tpu.memory_space<vmem>>) attributes {dimension_semantics = [#tpu.dimension_semantics<parallel>], iteration_bounds = array<i64: 1>, scalar_prefetch = 0 : i64, scratch_operands = 0 : i64, tpu.core_type = #tpu.core_type<tc>, window_params = [{transform_indices = @transform_0, window_bounds = array<i64: 8, 128>}, {pipeline_mode = #tpu.pipeline_mode<synchronous>, transform_indices = @transform_1, window_bounds = array<i64: 128, 128>}, {pipeline_mode = #tpu.pipeline_mode<synchronous>, transform_indices = @transform_2, window_bounds = array<i64: 1, 128>}, {pipeline_mode = #tpu.pipeline_mode<synchronous>, transform_indices = @transform_3, window_bounds = array<i64: 128, 128>}, {pipeline_mode = #tpu.pipeline_mode<synchronous>, transform_indices = @transform_4, window_bounds = array<i64: 1, 128>}, {pipeline_mode = #tpu.pipeline_mode<synchronous>, transform_indices = @transform_5, window_bounds = array<i64: 128, 128>}, {pipeline_mode = #tpu.pipeline_mode<synchronous>, transform_indices = @transform_6, window_bounds = array<i64: 1, 128>}, {pipeline_mode = #tpu.pipeline_mode<synchronous>, transform_indices = @transform_7, window_bounds = array<i64: 128, 128>}, {pipeline_mode = #tpu.pipeline_mode<synchronous>, transform_indices = @transform_8, window_bounds = array<i64: 1, 128>}, {pipeline_mode = #tpu.pipeline_mode<synchronous>, transform_indices = @transform_9, window_bounds = array<i64: 128, 128>}, {pipeline_mode = #tpu.pipeline_mode<synchronous>, transform_indices = @transform_10, window_bounds = array<i64: 1, 128>}, {pipeline_mode = #tpu.pipeline_mode<synchronous>, transform_indices = @transform_11, window_bounds = array<i64: 128, 128>}, {pipeline_mode = #tpu.pipeline_mode<synchronous>, transform_indices = @transform_12, window_bounds = array<i64: 1, 128>}, {transform_indices = @transform_13, window_bounds = array<i64: 8, 128>}, {transform_indices = @transform_14, window_bounds = array<i64: 8, 128>}]} {
    %c0 = arith.constant 0 : index
    %c0_0 = arith.constant 0 : index
    %0 = vector.load %arg1[%c0, %c0_0] : memref<8x128xf32, #tpu.memory_space<vmem>>, vector<8x128xf32>
    %c0_1 = arith.constant 0 : index
    %c0_2 = arith.constant 0 : index
    %1 = vector.load %arg2[%c0_1, %c0_2] : memref<128x128xf32, #tpu.memory_space<vmem>>, vector<128x128xf32>
    %cst = arith.constant dense<0.000000e+00> : vector<8x128xf32>
    %2 = tpu.matmul %0, %1, %cst {dimension_numbers = #tpu.dot_dimension_numbers<[1], [0], [0], [1], [0, 0, 1, 1], [], []>} : vector<8x128xf32>, vector<128x128xf32>, vector<8x128xf32> -> vector<8x128xf32>
    %c0_3 = arith.constant 0 : index
    %c0_4 = arith.constant 0 : index
    %3 = vector.load %arg3[%c0_3, %c0_4] : memref<1x128xf32, #tpu.memory_space<vmem>>, vector<1x128xf32>
    %4 = vector.broadcast %3 : vector<1x128xf32> to vector<8x128xf32>
    %5 = arith.addf %2, %4 : vector<8x128xf32>
    %cst_5 = arith.constant 0.000000e+00 : f32
    %6 = vector.broadcast %cst_5 : f32 to vector<8x128xf32>
    %7 = arith.maximumf %5, %6 : vector<8x128xf32>
    %c0_6 = arith.constant 0 : index
    %c0_7 = arith.constant 0 : index
    %8 = vector.load %arg4[%c0_6, %c0_7] : memref<128x128xf32, #tpu.memory_space<vmem>>, vector<128x128xf32>
    %cst_8 = arith.constant dense<0.000000e+00> : vector<8x128xf32>
    %9 = tpu.matmul %7, %8, %cst_8 {dimension_numbers = #tpu.dot_dimension_numbers<[1], [0], [0], [1], [0, 0, 1, 1], [], []>} : vector<8x128xf32>, vector<128x128xf32>, vector<8x128xf32> -> vector<8x128xf32>
    %c0_9 = arith.constant 0 : index
    %c0_10 = arith.constant 0 : index
    %10 = vector.load %arg5[%c0_9, %c0_10] : memref<1x128xf32, #tpu.memory_space<vmem>>, vector<1x128xf32>
    %11 = vector.broadcast %10 : vector<1x128xf32> to vector<8x128xf32>
    %12 = arith.addf %9, %11 : vector<8x128xf32>
    %cst_11 = arith.constant 0.000000e+00 : f32
    %13 = vector.broadcast %cst_11 : f32 to vector<8x128xf32>
    %14 = arith.maximumf %12, %13 : vector<8x128xf32>
    %c0_12 = arith.constant 0 : index
    %c0_13 = arith.constant 0 : index
    %15 = vector.load %arg6[%c0_12, %c0_13] : memref<128x128xf32, #tpu.memory_space<vmem>>, vector<128x128xf32>
    %cst_14 = arith.constant dense<0.000000e+00> : vector<8x128xf32>
    %16 = tpu.matmul %14, %15, %cst_14 {dimension_numbers = #tpu.dot_dimension_numbers<[1], [0], [0], [1], [0, 0, 1, 1], [], []>} : vector<8x128xf32>, vector<128x128xf32>, vector<8x128xf32> -> vector<8x128xf32>
    %c0_15 = arith.constant 0 : index
    %c0_16 = arith.constant 0 : index
    %17 = vector.load %arg7[%c0_15, %c0_16] : memref<1x128xf32, #tpu.memory_space<vmem>>, vector<1x128xf32>
    %18 = vector.broadcast %17 : vector<1x128xf32> to vector<8x128xf32>
    %19 = arith.addf %16, %18 : vector<8x128xf32>
    %c0_17 = arith.constant 0 : index
    %c0_18 = arith.constant 0 : index
    %20 = vector.load %arg14[%c0_17, %c0_18] : memref<8x128xf32, #tpu.memory_space<vmem>>, vector<8x128xf32>
    tpu.vector_store %arg14[%c0_17, %c0_18], %19 {strides = array<i32>} : memref<8x128xf32, #tpu.memory_space<vmem>>, vector<8x128xf32>,
    %c0_19 = arith.constant 0 : index
    %c0_20 = arith.constant 0 : index
    %21 = vector.load %arg8[%c0_19, %c0_20] : memref<128x128xf32, #tpu.memory_space<vmem>>, vector<128x128xf32>
    %cst_21 = arith.constant dense<0.000000e+00> : vector<8x128xf32>
    %22 = tpu.matmul %19, %21, %cst_21 {dimension_numbers = #tpu.dot_dimension_numbers<[1], [0], [0], [1], [0, 0, 1, 1], [], []>} : vector<8x128xf32>, vector<128x128xf32>, vector<8x128xf32> -> vector<8x128xf32>
    %c0_22 = arith.constant 0 : index
    %c0_23 = arith.constant 0 : index
    %23 = vector.load %arg9[%c0_22, %c0_23] : memref<1x128xf32, #tpu.memory_space<vmem>>, vector<1x128xf32>
    %24 = vector.broadcast %23 : vector<1x128xf32> to vector<8x128xf32>
    %25 = arith.addf %22, %24 : vector<8x128xf32>
    %cst_24 = arith.constant 0.000000e+00 : f32
    %26 = vector.broadcast %cst_24 : f32 to vector<8x128xf32>
    %27 = arith.maximumf %25, %26 : vector<8x128xf32>
    %c0_25 = arith.constant 0 : index
    %c0_26 = arith.constant 0 : index
    %28 = vector.load %arg10[%c0_25, %c0_26] : memref<128x128xf32, #tpu.memory_space<vmem>>, vector<128x128xf32>
    %cst_27 = arith.constant dense<0.000000e+00> : vector<8x128xf32>
    %29 = tpu.matmul %27, %28, %cst_27 {dimension_numbers = #tpu.dot_dimension_numbers<[1], [0], [0], [1], [0, 0, 1, 1], [], []>} : vector<8x128xf32>, vector<128x128xf32>, vector<8x128xf32> -> vector<8x128xf32>
    %c0_28 = arith.constant 0 : index
    %c0_29 = arith.constant 0 : index
    %30 = vector.load %arg11[%c0_28, %c0_29] : memref<1x128xf32, #tpu.memory_space<vmem>>, vector<1x128xf32>
    %31 = vector.broadcast %30 : vector<1x128xf32> to vector<8x128xf32>
    %32 = arith.addf %29, %31 : vector<8x128xf32>
    %cst_30 = arith.constant 0.000000e+00 : f32
    %33 = vector.broadcast %cst_30 : f32 to vector<8x128xf32>
    %34 = arith.maximumf %32, %33 : vector<8x128xf32>
    %c0_31 = arith.constant 0 : index
    %c0_32 = arith.constant 0 : index
    %35 = vector.load %arg12[%c0_31, %c0_32] : memref<128x128xf32, #tpu.memory_space<vmem>>, vector<128x128xf32>
    %cst_33 = arith.constant dense<0.000000e+00> : vector<8x128xf32>
    %36 = tpu.matmul %34, %35, %cst_33 {dimension_numbers = #tpu.dot_dimension_numbers<[1], [0], [0], [1], [0, 0, 1, 1], [], []>} : vector<8x128xf32>, vector<128x128xf32>, vector<8x128xf32> -> vector<8x128xf32>
    %c0_34 = arith.constant 0 : index
    %c0_35 = arith.constant 0 : index
    %37 = vector.load %arg13[%c0_34, %c0_35] : memref<1x128xf32, #tpu.memory_space<vmem>>, vector<1x128xf32>
    %38 = vector.broadcast %37 : vector<1x128xf32> to vector<8x128xf32>
    %39 = arith.addf %36, %38 : vector<8x128xf32>
    %c0_36 = arith.constant 0 : index
    %c0_37 = arith.constant 0 : index
    %40 = vector.load %arg15[%c0_36, %c0_37] : memref<8x128xf32, #tpu.memory_space<vmem>>, vector<8x128xf32>
    tpu.vector_store %arg15[%c0_36, %c0_37], %39 {strides = array<i32>} : memref<8x128xf32, #tpu.memory_space<vmem>>, vector<8x128xf32>,
    return
  }
  func.func @transform_0(%arg0: i32) -> (i32, i32) {
    %c0_i32 = arith.constant 0 : i32
    %c0_i32_0 = arith.constant 0 : i32
    return %arg0, %c0_i32 : i32, i32
  }
  func.func @transform_1(%arg0: i32) -> (i32, i32) {
    %c0_i32 = arith.constant 0 : i32
    %c0_i32_0 = arith.constant 0 : i32
    %c0_i32_1 = arith.constant 0 : i32
    return %c0_i32, %c0_i32_0 : i32, i32
  }
  func.func @transform_2(%arg0: i32) -> (i32, i32) {
    %c0_i32 = arith.constant 0 : i32
    %c0_i32_0 = arith.constant 0 : i32
    %c0_i32_1 = arith.constant 0 : i32
    return %c0_i32, %c0_i32_0 : i32, i32
  }
  func.func @transform_3(%arg0: i32) -> (i32, i32) {
    %c0_i32 = arith.constant 0 : i32
    %c0_i32_0 = arith.constant 0 : i32
    %c0_i32_1 = arith.constant 0 : i32
    return %c0_i32, %c0_i32_0 : i32, i32
  }
  func.func @transform_4(%arg0: i32) -> (i32, i32) {
    %c0_i32 = arith.constant 0 : i32
    %c0_i32_0 = arith.constant 0 : i32
    %c0_i32_1 = arith.constant 0 : i32
    return %c0_i32, %c0_i32_0 : i32, i32
  }
  func.func @transform_5(%arg0: i32) -> (i32, i32) {
    %c0_i32 = arith.constant 0 : i32
    %c0_i32_0 = arith.constant 0 : i32
    %c0_i32_1 = arith.constant 0 : i32
    return %c0_i32, %c0_i32_0 : i32, i32
  }
  func.func @transform_6(%arg0: i32) -> (i32, i32) {
    %c0_i32 = arith.constant 0 : i32
    %c0_i32_0 = arith.constant 0 : i32
    %c0_i32_1 = arith.constant 0 : i32
    return %c0_i32, %c0_i32_0 : i32, i32
  }
  func.func @transform_7(%arg0: i32) -> (i32, i32) {
    %c0_i32 = arith.constant 0 : i32
    %c0_i32_0 = arith.constant 0 : i32
    %c0_i32_1 = arith.constant 0 : i32
    return %c0_i32, %c0_i32_0 : i32, i32
  }
  func.func @transform_8(%arg0: i32) -> (i32, i32) {
    %c0_i32 = arith.constant 0 : i32
    %c0_i32_0 = arith.constant 0 : i32
    %c0_i32_1 = arith.constant 0 : i32
    return %c0_i32, %c0_i32_0 : i32, i32
  }
  func.func @transform_9(%arg0: i32) -> (i32, i32) {
    %c0_i32 = arith.constant 0 : i32
    %c0_i32_0 = arith.constant 0 : i32
    %c0_i32_1 = arith.constant 0 : i32
    return %c0_i32, %c0_i32_0 : i32, i32
  }
  func.func @transform_10(%arg0: i32) -> (i32, i32) {
    %c0_i32 = arith.constant 0 : i32
    %c0_i32_0 = arith.constant 0 : i32
    %c0_i32_1 = arith.constant 0 : i32
    return %c0_i32, %c0_i32_0 : i32, i32
  }
  func.func @transform_11(%arg0: i32) -> (i32, i32) {
    %c0_i32 = arith.constant 0 : i32
    %c0_i32_0 = arith.constant 0 : i32
    %c0_i32_1 = arith.constant 0 : i32
    return %c0_i32, %c0_i32_0 : i32, i32
  }
  func.func @transform_12(%arg0: i32) -> (i32, i32) {
    %c0_i32 = arith.constant 0 : i32
    %c0_i32_0 = arith.constant 0 : i32
    %c0_i32_1 = arith.constant 0 : i32
    return %c0_i32, %c0_i32_0 : i32, i32
  }
  func.func @transform_13(%arg0: i32) -> (i32, i32) {
    %c0_i32 = arith.constant 0 : i32
    %c0_i32_0 = arith.constant 0 : i32
    return %arg0, %c0_i32 : i32, i32
  }
  func.func @transform_14(%arg0: i32) -> (i32, i32) {
    %c0_i32 = arith.constant 0 : i32
    %c0_i32_0 = arith.constant 0 : i32
    return %arg0, %c0_i32 : i32, i32
  }
}

</mosaic_0001>

<llo_original>
// kernel: autoencoder_forward.1
$region0: #{autoencoder_forward.1}
  #allocation0 [shape = 'u32[]', space=smem, size = 0x4, offset = 0x4, fixed_abs, tag = 'smem constant byte address 0x4 - core index']
  #allocation1 [shape = 'u32[144,128]{1,0:T(1,128)}', space=vmem, size = 0x12000, scoped, tag = 'internal scratch']
  %s0 = inlined_call_operand.vmem [shape: f32[8,128], index: 0, kind: input, shape index: {}]
  %s1 = inlined_call_operand.vmem [shape: f32[128,128], index: 1, kind: input, shape index: {}]
  %s2 = inlined_call_operand.vmem [shape: f32[1,128], index: 2, kind: input, shape index: {}]
  %s3 = inlined_call_operand.vmem [shape: f32[128,128], index: 3, kind: input, shape index: {}]
  %s4 = inlined_call_operand.vmem [shape: f32[1,128], index: 4, kind: input, shape index: {}]
  %s5 = inlined_call_operand.vmem [shape: f32[128,128], index: 5, kind: input, shape index: {}]
  %s6 = inlined_call_operand.vmem [shape: f32[1,128], index: 6, kind: input, shape index: {}]
  %s7 = inlined_call_operand.vmem [shape: f32[128,128], index: 7, kind: input, shape index: {}]
  %s8 = inlined_call_operand.vmem [shape: f32[1,128], index: 8, kind: input, shape index: {}]
  %s9 = inlined_call_operand.vmem [shape: f32[128,128], index: 9, kind: input, shape index: {}]
  %s10 = inlined_call_operand.vmem [shape: f32[1,128], index: 10, kind: input, shape index: {}]
  %s11 = inlined_call_operand.vmem [shape: f32[128,128], index: 11, kind: input, shape index: {}]
  %s12 = inlined_call_operand.vmem [shape: f32[1,128], index: 12, kind: input, shape index: {}]
  %s13 = inlined_call_operand.hbm [shape: f32[8,128], index: 13, kind: output, shape index: {0}]
  %s14 = inlined_call_operand.hbm [shape: f32[8,128], index: 14, kind: output, shape index: {1}]
  %15 = xla_tuple %s13, %s14
  %s16 = sld [smem:[#allocation0]]
  $region70: #{autoencoder_forward.1} parent=0
    _
  %s18 = ssub.s32 1, %s16
  %s19 = scalar_select 0, %s18, %s16
  $region1: #{autoencoder_forward.1} parent=0
    #allocation2 [shape = 'u8[4096]{0}', space=vmem, size = 0x1000, scoped, tag = 'output window, operand 0, single buffered']
    #allocation3 [shape = 's32[1]{0}', space=sflag, size = 0x4, scoped, tag = 'scoped memory for autoencoder_forward.1']
    #allocation4 [shape = 'u8[4096]{0}', space=vmem, size = 0x1000, scoped, tag = 'output window, operand 1, single buffered']
    #allocation5 [shape = 's32[1]{0}', space=sflag, size = 0x4, scoped, tag = 'scoped memory for autoencoder_forward.1']
    %20 = vsyncpa [#allocation3], 0
    %21 = vsyncpa [#allocation5], 0
    // Predicated region
    $region2: #{autoencoder_forward.1} parent=1 // pred_check
      _
    $region3: #{autoencoder_forward.1} parent=1 // pred_check_branch
      %23 = sbr.rel (0) target = $region5
    $region4: #{autoencoder_forward.1} parent=1 // pred_region
      _
    $region5: #{autoencoder_forward.1} parent=1 // pred_fallthru
      _
    // Predicated region
    $region6: #{autoencoder_forward.1} parent=1 // pred_check
      _
    $region7: #{autoencoder_forward.1} parent=1 // pred_check_branch
      %25 = sbr.rel (0) target = $region9
    $region8: #{autoencoder_forward.1} parent=1 // pred_region
      _
    $region9: #{autoencoder_forward.1} parent=1 // pred_fallthru
      _
    // Predicated region
    $region10: #{autoencoder_forward.1} parent=1 // pred_check
      _
    $region11: #{autoencoder_forward.1} parent=1 // pred_check_branch
      %27 = sbr.rel (0) target = $region13
    $region12: #{autoencoder_forward.1} parent=1 // pred_region
      _
    $region13: #{autoencoder_forward.1} parent=1 // pred_fallthru
      _
    // Predicated region
    $region14: #{autoencoder_forward.1} parent=1 // pred_check
      _
    $region15: #{autoencoder_forward.1} parent=1 // pred_check_branch
      %29 = sbr.rel (0) target = $region17
    $region16: #{autoencoder_forward.1} parent=1 // pred_region
      _
    $region17: #{autoencoder_forward.1} parent=1 // pred_fallthru
      _
    // Predicated region
    $region18: #{autoencoder_forward.1} parent=1 // pred_check
      _
    $region19: #{autoencoder_forward.1} parent=1 // pred_check_branch
      %31 = sbr.rel (0) target = $region21
    $region20: #{autoencoder_forward.1} parent=1 // pred_region
      _
    $region21: #{autoencoder_forward.1} parent=1 // pred_fallthru
      _
    // Predicated region
    $region22: #{autoencoder_forward.1} parent=1 // pred_check
      _
    $region23: #{autoencoder_forward.1} parent=1 // pred_check_branch
      %33 = sbr.rel (0) target = $region25
    $region24: #{autoencoder_forward.1} parent=1 // pred_region
      _
    $region25: #{autoencoder_forward.1} parent=1 // pred_fallthru
      _
    // Predicated region
    $region26: #{autoencoder_forward.1} parent=1 // pred_check
      _
    $region27: #{autoencoder_forward.1} parent=1 // pred_check_branch
      %35 = sbr.rel (0) target = $region29
    $region28: #{autoencoder_forward.1} parent=1 // pred_region
      _
    $region29: #{autoencoder_forward.1} parent=1 // pred_fallthru
      _
    // Predicated region
    $region30: #{autoencoder_forward.1} parent=1 // pred_check
      _
    $region31: #{autoencoder_forward.1} parent=1 // pred_check_branch
      %37 = sbr.rel (0) target = $region33
    $region32: #{autoencoder_forward.1} parent=1 // pred_region
      _
    $region33: #{autoencoder_forward.1} parent=1 // pred_fallthru
      _
    // Predicated region
    $region34: #{autoencoder_forward.1} parent=1 // pred_check
      _
    $region35: #{autoencoder_forward.1} parent=1 // pred_check_branch
      %39 = sbr.rel (0) target = $region37
    $region36: #{autoencoder_forward.1} parent=1 // pred_region
      _
    $region37: #{autoencoder_forward.1} parent=1 // pred_fallthru
      _
    // Predicated region
    $region38: #{autoencoder_forward.1} parent=1 // pred_check
      _
    $region39: #{autoencoder_forward.1} parent=1 // pred_check_branch
      %41 = sbr.rel (0) target = $region41
    $region40: #{autoencoder_forward.1} parent=1 // pred_region
      _
    $region41: #{autoencoder_forward.1} parent=1 // pred_fallthru
      _
    // Predicated region
    $region42: #{autoencoder_forward.1} parent=1 // pred_check
      _
    $region43: #{autoencoder_forward.1} parent=1 // pred_check_branch
      %43 = sbr.rel (0) target = $region45
    $region44: #{autoencoder_forward.1} parent=1 // pred_region
      _
    $region45: #{autoencoder_forward.1} parent=1 // pred_fallthru
      _
    // Predicated region
    $region46: #{autoencoder_forward.1} parent=1 // pred_check
      _
    $region47: #{autoencoder_forward.1} parent=1 // pred_check_branch
      %45 = sbr.rel (0) target = $region49
    $region48: #{autoencoder_forward.1} parent=1 // pred_region
      _
    $region49: #{autoencoder_forward.1} parent=1 // pred_fallthru
      _
    // Predicated region
    $region50: #{autoencoder_forward.1} parent=1 // pred_check
      _
    $region51: #{autoencoder_forward.1} parent=1 // pred_check_branch
      %47 = sbr.rel (0) target = $region53
    $region52: #{autoencoder_forward.1} parent=1 // pred_region
      _
    $region53: #{autoencoder_forward.1} parent=1 // pred_fallthru
      _
    %v48 = vld [vmem:[%s0] sm:$0xff]
    %v49 = vld [vmem:[%s1] sm:$0xff]
    %v50 = vld [vmem:[%s1 + $0x8] sm:$0xff]
    %v51 = vld [vmem:[%s1 + $0x10] sm:$0xff]
    %v52 = vld [vmem:[%s1 + $0x18] sm:$0xff]
    %v53 = vld [vmem:[%s1 + $0x20] sm:$0xff]
    %v54 = vld [vmem:[%s1 + $0x28] sm:$0xff]
    %v55 = vld [vmem:[%s1 + $0x30] sm:$0xff]
    %v56 = vld [vmem:[%s1 + $0x38] sm:$0xff]
    %v57 = vld [vmem:[%s1 + $0x40] sm:$0xff]
    %v58 = vld [vmem:[%s1 + $0x48] sm:$0xff]
    %v59 = vld [vmem:[%s1 + $0x50] sm:$0xff]
    %v60 = vld [vmem:[%s1 + $0x58] sm:$0xff]
    %v61 = vld [vmem:[%s1 + $0x60] sm:$0xff]
    %v62 = vld [vmem:[%s1 + $0x68] sm:$0xff]
    %v63 = vld [vmem:[%s1 + $0x70] sm:$0xff]
    %v64 = vld [vmem:[%s1 + $0x78] sm:$0xff]
    %v65 = vld [vmem:[%s2] sm:$0x1]
    %v67 = vlaneseq
    %v68 = vshrl.u32 %v67, 7
    %v69 = vsub.s32 0, %v68
    %v70 = vrot.slane %v65, %v69
    %72 = vmatprep.subr.mxu0 0.0
    %73 = vmatpush1.msra.mxu0 %v64
    %74 = vmatprep.subr.mxu0 0.0
    %75 = vmatpush1.msra.mxu0 %v63
    %76 = vmatprep.subr.mxu0 0.0
    %77 = vmatpush1.msra.mxu0 %v62
    %78 = vmatprep.subr.mxu0 0.0
    %79 = vmatpush1.msra.mxu0 %v61
    %80 = vmatprep.subr.mxu0 0.0
    %81 = vmatpush1.msra.mxu0 %v60
    %82 = vmatprep.subr.mxu0 0.0
    %83 = vmatpush1.msra.mxu0 %v59
    %84 = vmatprep.subr.mxu0 0.0
    %85 = vmatpush1.msra.mxu0 %v58
    %86 = vmatprep.subr.mxu0 0.0
    %87 = vmatpush1.msra.mxu0 %v57
    %88 = vmatprep.subr.mxu0 0.0
    %89 = vmatpush1.msra.mxu0 %v56
    %90 = vmatprep.subr.mxu0 0.0
    %91 = vmatpush1.msra.mxu0 %v55
    %92 = vmatprep.subr.mxu0 0.0
    %93 = vmatpush1.msra.mxu0 %v54
    %94 = vmatprep.subr.mxu0 0.0
    %95 = vmatpush1.msra.mxu0 %v53
    %96 = vmatprep.subr.mxu0 0.0
    %97 = vmatpush1.msra.mxu0 %v52
    %98 = vmatprep.subr.mxu0 0.0
    %99 = vmatpush1.msra.mxu0 %v51
    %100 = vmatprep.subr.mxu0 0.0
    %101 = vmatpush1.msra.mxu0 %v50
    %102 = vmatprep.subr.mxu0 0.0
    %103 = vmatpush1.msra.mxu0 %v49
    %104 = vmatprep.subr.mxu0 0.0
    %105 = vmatpush2.msra.mxu0 0.0
    %106 = vmatprep.subr.mxu0 0.0
    %107 = vmatpush2.msra.mxu0 0.0
    %108 = vmatprep.subr.mxu0 0.0
    %109 = vmatpush2.msra.mxu0 0.0
    %110 = vmatprep.subr.mxu0 0.0
    %111 = vmatpush2.msra.mxu0 0.0
    %112 = vmatprep.subr.mxu0 0.0
    %113 = vmatpush2.msra.mxu0 0.0
    %114 = vmatprep.subr.mxu0 0.0
    %115 = vmatpush2.msra.mxu0 0.0
    %116 = vmatprep.subr.mxu0 0.0
    %117 = vmatpush2.msra.mxu0 0.0
    %118 = vmatprep.subr.mxu0 0.0
    %119 = vmatpush2.msra.mxu0 0.0
    %120 = vmatprep.subr.mxu0 0.0
    %121 = vmatpush2.msra.mxu0 0.0
    %122 = vmatprep.subr.mxu0 0.0
    %123 = vmatpush2.msra.mxu0 0.0
    %124 = vmatprep.subr.mxu0 0.0
    %125 = vmatpush2.msra.mxu0 0.0
    %126 = vmatprep.subr.mxu0 0.0
    %127 = vmatpush2.msra.mxu0 0.0
    %128 = vmatprep.subr.mxu0 0.0
    %129 = vmatpush2.msra.mxu0 0.0
    %130 = vmatprep.subr.mxu0 0.0
    %131 = vmatpush2.msra.mxu0 0.0
    %132 = vmatprep.subr.mxu0 0.0
    %133 = vmatpush2.msra.mxu0 0.0
    %134 = vmatprep.subr.mxu0 0.0
    %135 = vmatpush2.msra.mxu0 0.0
    %136 = vmatprep.mubr.f32.mxu0 0.0
    %137 = vmatmul.mubr.f32.gmra.mxu0 %v48
    %v138 = vpop.f32.mrf.mxu0
    %v139 = vadd.f32 %v70, %v138
    %v140 = vpop.f32.mrf.mxu0
    %141 = vdwg.mxu0
    %v142 = vmax.f32 %v139, 0.0
    %v143 = vld [vmem:[%s3] sm:$0xff]
    %v144 = vld [vmem:[%s3 + $0x8] sm:$0xff]
    %v145 = vld [vmem:[%s3 + $0x10] sm:$0xff]
    %v146 = vld [vmem:[%s3 + $0x18] sm:$0xff]
    %v147 = vld [vmem:[%s3 + $0x20] sm:$0xff]
    %v148 = vld [vmem:[%s3 + $0x28] sm:$0xff]
    %v149 = vld [vmem:[%s3 + $0x30] sm:$0xff]
    %v150 = vld [vmem:[%s3 + $0x38] sm:$0xff]
    %v151 = vld [vmem:[%s3 + $0x40] sm:$0xff]
    %v152 = vld [vmem:[%s3 + $0x48] sm:$0xff]
    %v153 = vld [vmem:[%s3 + $0x50] sm:$0xff]
    %v154 = vld [vmem:[%s3 + $0x58] sm:$0xff]
    %v155 = vld [vmem:[%s3 + $0x60] sm:$0xff]
    %v156 = vld [vmem:[%s3 + $0x68] sm:$0xff]
    %v157 = vld [vmem:[%s3 + $0x70] sm:$0xff]
    %v158 = vld [vmem:[%s3 + $0x78] sm:$0xff]
    %v159 = vld [vmem:[%s4] sm:$0x1]
    %v161 = vlaneseq
    %v162 = vshrl.u32 %v161, 7
    %v163 = vsub.s32 0, %v162
    %v164 = vrot.slane %v159, %v163
    %166 = vmatprep.subr.mxu0 0.0
    %167 = vmatpush1.msra.mxu0 %v158
    %168 = vmatprep.subr.mxu0 0.0
    %169 = vmatpush1.msra.mxu0 %v157
    %170 = vmatprep.subr.mxu0 0.0
    %171 = vmatpush1.msra.mxu0 %v156
    %172 = vmatprep.subr.mxu0 0.0
    %173 = vmatpush1.msra.mxu0 %v155
    %174 = vmatprep.subr.mxu0 0.0
    %175 = vmatpush1.msra.mxu0 %v154
    %176 = vmatprep.subr.mxu0 0.0
    %177 = vmatpush1.msra.mxu0 %v153
    %178 = vmatprep.subr.mxu0 0.0
    %179 = vmatpush1.msra.mxu0 %v152
    %180 = vmatprep.subr.mxu0 0.0
    %181 = vmatpush1.msra.mxu0 %v151
    %182 = vmatprep.subr.mxu0 0.0
    %183 = vmatpush1.msra.mxu0 %v150
    %184 = vmatprep.subr.mxu0 0.0
    %185 = vmatpush1.msra.mxu0 %v149
    %186 = vmatprep.subr.mxu0 0.0
    %187 = vmatpush1.msra.mxu0 %v148
    %188 = vmatprep.subr.mxu0 0.0
    %189 = vmatpush1.msra.mxu0 %v147
    %190 = vmatprep.subr.mxu0 0.0
    %191 = vmatpush1.msra.mxu0 %v146
    %192 = vmatprep.subr.mxu0 0.0
    %193 = vmatpush1.msra.mxu0 %v145
    %194 = vmatprep.subr.mxu0 0.0
    %195 = vmatpush1.msra.mxu0 %v144
    %196 = vmatprep.subr.mxu0 0.0
    %197 = vmatpush1.msra.mxu0 %v143
    %198 = vmatprep.subr.mxu0 0.0
    %199 = vmatpush2.msra.mxu0 0.0
    %200 = vmatprep.subr.mxu0 0.0
    %201 = vmatpush2.msra.mxu0 0.0
    %202 = vmatprep.subr.mxu0 0.0
    %203 = vmatpush2.msra.mxu0 0.0
    %204 = vmatprep.subr.mxu0 0.0
    %205 = vmatpush2.msra.mxu0 0.0
    %206 = vmatprep.subr.mxu0 0.0
    %207 = vmatpush2.msra.mxu0 0.0
    %208 = vmatprep.subr.mxu0 0.0
    %209 = vmatpush2.msra.mxu0 0.0
    %210 = vmatprep.subr.mxu0 0.0
    %211 = vmatpush2.msra.mxu0 0.0
    %212 = vmatprep.subr.mxu0 0.0
    %213 = vmatpush2.msra.mxu0 0.0
    %214 = vmatprep.subr.mxu0 0.0
    %215 = vmatpush2.msra.mxu0 0.0
    %216 = vmatprep.subr.mxu0 0.0
    %217 = vmatpush2.msra.mxu0 0.0
    %218 = vmatprep.subr.mxu0 0.0
    %219 = vmatpush2.msra.mxu0 0.0
    %220 = vmatprep.subr.mxu0 0.0
    %221 = vmatpush2.msra.mxu0 0.0
    %222 = vmatprep.subr.mxu0 0.0
    %223 = vmatpush2.msra.mxu0 0.0
    %224 = vmatprep.subr.mxu0 0.0
    %225 = vmatpush2.msra.mxu0 0.0
    %226 = vmatprep.subr.mxu0 0.0
    %227 = vmatpush2.msra.mxu0 0.0
    %228 = vmatprep.subr.mxu0 0.0
    %229 = vmatpush2.msra.mxu0 0.0
    %230 = vmatprep.mubr.f32.mxu0 0.0
    %231 = vmatmul.mubr.f32.gmra.mxu0 %v142
    %v232 = vpop.f32.mrf.mxu0
    %v233 = vadd.f32 %v164, %v232
    %v234 = vpop.f32.mrf.mxu0
    %235 = vdwg.mxu0
    %v236 = vmax.f32 %v233, 0.0
    %v237 = vld [vmem:[%s5] sm:$0xff]
    %v238 = vld [vmem:[%s5 + $0x8] sm:$0xff]
    %v239 = vld [vmem:[%s5 + $0x10] sm:$0xff]
    %v240 = vld [vmem:[%s5 + $0x18] sm:$0xff]
    %v241 = vld [vmem:[%s5 + $0x20] sm:$0xff]
    %v242 = vld [vmem:[%s5 + $0x28] sm:$0xff]
    %v243 = vld [vmem:[%s5 + $0x30] sm:$0xff]
    %v244 = vld [vmem:[%s5 + $0x38] sm:$0xff]
    %v245 = vld [vmem:[%s5 + $0x40] sm:$0xff]
    %v246 = vld [vmem:[%s5 + $0x48] sm:$0xff]
    %v247 = vld [vmem:[%s5 + $0x50] sm:$0xff]
    %v248 = vld [vmem:[%s5 + $0x58] sm:$0xff]
    %v249 = vld [vmem:[%s5 + $0x60] sm:$0xff]
    %v250 = vld [vmem:[%s5 + $0x68] sm:$0xff]
    %v251 = vld [vmem:[%s5 + $0x70] sm:$0xff]
    %v252 = vld [vmem:[%s5 + $0x78] sm:$0xff]
    %v253 = vld [vmem:[%s6] sm:$0x1]
    %v255 = vlaneseq
    %v256 = vshrl.u32 %v255, 7
    %v257 = vsub.s32 0, %v256
    %v258 = vrot.slane %v253, %v257
    %260 = vmatprep.subr.mxu0 0.0
    %261 = vmatpush1.msra.mxu0 %v252
    %262 = vmatprep.subr.mxu0 0.0
    %263 = vmatpush1.msra.mxu0 %v251
    %264 = vmatprep.subr.mxu0 0.0
    %265 = vmatpush1.msra.mxu0 %v250
    %266 = vmatprep.subr.mxu0 0.0
    %267 = vmatpush1.msra.mxu0 %v249
    %268 = vmatprep.subr.mxu0 0.0
    %269 = vmatpush1.msra.mxu0 %v248
    %270 = vmatprep.subr.mxu0 0.0
    %271 = vmatpush1.msra.mxu0 %v247
    %272 = vmatprep.subr.mxu0 0.0
    %273 = vmatpush1.msra.mxu0 %v246
    %274 = vmatprep.subr.mxu0 0.0
    %275 = vmatpush1.msra.mxu0 %v245
    %276 = vmatprep.subr.mxu0 0.0
    %277 = vmatpush1.msra.mxu0 %v244
    %278 = vmatprep.subr.mxu0 0.0
    %279 = vmatpush1.msra.mxu0 %v243
    %280 = vmatprep.subr.mxu0 0.0
    %281 = vmatpush1.msra.mxu0 %v242
    %282 = vmatprep.subr.mxu0 0.0
    %283 = vmatpush1.msra.mxu0 %v241
    %284 = vmatprep.subr.mxu0 0.0
    %285 = vmatpush1.msra.mxu0 %v240
    %286 = vmatprep.subr.mxu0 0.0
    %287 = vmatpush1.msra.mxu0 %v239
    %288 = vmatprep.subr.mxu0 0.0
    %289 = vmatpush1.msra.mxu0 %v238
    %290 = vmatprep.subr.mxu0 0.0
    %291 = vmatpush1.msra.mxu0 %v237
    %292 = vmatprep.subr.mxu0 0.0
    %293 = vmatpush2.msra.mxu0 0.0
    %294 = vmatprep.subr.mxu0 0.0
    %295 = vmatpush2.msra.mxu0 0.0
    %296 = vmatprep.subr.mxu0 0.0
    %297 = vmatpush2.msra.mxu0 0.0
    %298 = vmatprep.subr.mxu0 0.0
    %299 = vmatpush2.msra.mxu0 0.0
    %300 = vmatprep.subr.mxu0 0.0
    %301 = vmatpush2.msra.mxu0 0.0
    %302 = vmatprep.subr.mxu0 0.0
    %303 = vmatpush2.msra.mxu0 0.0
    %304 = vmatprep.subr.mxu0 0.0
    %305 = vmatpush2.msra.mxu0 0.0
    %306 = vmatprep.subr.mxu0 0.0
    %307 = vmatpush2.msra.mxu0 0.0
    %308 = vmatprep.subr.mxu0 0.0
    %309 = vmatpush2.msra.mxu0 0.0
    %310 = vmatprep.subr.mxu0 0.0
    %311 = vmatpush2.msra.mxu0 0.0
    %312 = vmatprep.subr.mxu0 0.0
    %313 = vmatpush2.msra.mxu0 0.0
    %314 = vmatprep.subr.mxu0 0.0
    %315 = vmatpush2.msra.mxu0 0.0
    %316 = vmatprep.subr.mxu0 0.0
    %317 = vmatpush2.msra.mxu0 0.0
    %318 = vmatprep.subr.mxu0 0.0
    %319 = vmatpush2.msra.mxu0 0.0
    %320 = vmatprep.subr.mxu0 0.0
    %321 = vmatpush2.msra.mxu0 0.0
    %322 = vmatprep.subr.mxu0 0.0
    %323 = vmatpush2.msra.mxu0 0.0
    %324 = vmatprep.mubr.f32.mxu0 0.0
    %325 = vmatmul.mubr.f32.gmra.mxu0 %v236
    %v326 = vpop.f32.mrf.mxu0
    %v327 = vadd.f32 %v258, %v326
    %v328 = vpop.f32.mrf.mxu0
    %329 = vdwg.mxu0
    %330 = vst [vmem:[#allocation2] sm:$0xff] %v327
    %v331 = vld [vmem:[%s7] sm:$0xff]
    %v332 = vld [vmem:[%s7 + $0x8] sm:$0xff]
    %v333 = vld [vmem:[%s7 + $0x10] sm:$0xff]
    %v334 = vld [vmem:[%s7 + $0x18] sm:$0xff]
    %v335 = vld [vmem:[%s7 + $0x20] sm:$0xff]
    %v336 = vld [vmem:[%s7 + $0x28] sm:$0xff]
    %v337 = vld [vmem:[%s7 + $0x30] sm:$0xff]
    %v338 = vld [vmem:[%s7 + $0x38] sm:$0xff]
    %v339 = vld [vmem:[%s7 + $0x40] sm:$0xff]
    %v340 = vld [vmem:[%s7 + $0x48] sm:$0xff]
    %v341 = vld [vmem:[%s7 + $0x50] sm:$0xff]
    %v342 = vld [vmem:[%s7 + $0x58] sm:$0xff]
    %v343 = vld [vmem:[%s7 + $0x60] sm:$0xff]
    %v344 = vld [vmem:[%s7 + $0x68] sm:$0xff]
    %v345 = vld [vmem:[%s7 + $0x70] sm:$0xff]
    %v346 = vld [vmem:[%s7 + $0x78] sm:$0xff]
    %v347 = vld [vmem:[%s8] sm:$0x1]
    %v349 = vlaneseq
    %v350 = vshrl.u32 %v349, 7
    %v351 = vsub.s32 0, %v350
    %v352 = vrot.slane %v347, %v351
    %354 = vmatprep.subr.mxu0 0.0
    %355 = vmatpush1.msra.mxu0 %v346
    %356 = vmatprep.subr.mxu0 0.0
    %357 = vmatpush1.msra.mxu0 %v345
    %358 = vmatprep.subr.mxu0 0.0
    %359 = vmatpush1.msra.mxu0 %v344
    %360 = vmatprep.subr.mxu0 0.0
    %361 = vmatpush1.msra.mxu0 %v343
    %362 = vmatprep.subr.mxu0 0.0
    %363 = vmatpush1.msra.mxu0 %v342
    %364 = vmatprep.subr.mxu0 0.0
    %365 = vmatpush1.msra.mxu0 %v341
    %366 = vmatprep.subr.mxu0 0.0
    %367 = vmatpush1.msra.mxu0 %v340
    %368 = vmatprep.subr.mxu0 0.0
    %369 = vmatpush1.msra.mxu0 %v339
    %370 = vmatprep.subr.mxu0 0.0
    %371 = vmatpush1.msra.mxu0 %v338
    %372 = vmatprep.subr.mxu0 0.0
    %373 = vmatpush1.msra.mxu0 %v337
    %374 = vmatprep.subr.mxu0 0.0
    %375 = vmatpush1.msra.mxu0 %v336
    %376 = vmatprep.subr.mxu0 0.0
    %377 = vmatpush1.msra.mxu0 %v335
    %378 = vmatprep.subr.mxu0 0.0
    %379 = vmatpush1.msra.mxu0 %v334
    %380 = vmatprep.subr.mxu0 0.0
    %381 = vmatpush1.msra.mxu0 %v333
    %382 = vmatprep.subr.mxu0 0.0
    %383 = vmatpush1.msra.mxu0 %v332
    %384 = vmatprep.subr.mxu0 0.0
    %385 = vmatpush1.msra.mxu0 %v331
    %386 = vmatprep.subr.mxu0 0.0
    %387 = vmatpush2.msra.mxu0 0.0
    %388 = vmatprep.subr.mxu0 0.0
    %389 = vmatpush2.msra.mxu0 0.0
    %390 = vmatprep.subr.mxu0 0.0
    %391 = vmatpush2.msra.mxu0 0.0
    %392 = vmatprep.subr.mxu0 0.0
    %393 = vmatpush2.msra.mxu0 0.0
    %394 = vmatprep.subr.mxu0 0.0
    %395 = vmatpush2.msra.mxu0 0.0
    %396 = vmatprep.subr.mxu0 0.0
    %397 = vmatpush2.msra.mxu0 0.0
    %398 = vmatprep.subr.mxu0 0.0
    %399 = vmatpush2.msra.mxu0 0.0
    %400 = vmatprep.subr.mxu0 0.0
    %401 = vmatpush2.msra.mxu0 0.0
    %402 = vmatprep.subr.mxu0 0.0
    %403 = vmatpush2.msra.mxu0 0.0
    %404 = vmatprep.subr.mxu0 0.0
    %405 = vmatpush2.msra.mxu0 0.0
    %406 = vmatprep.subr.mxu0 0.0
    %407 = vmatpush2.msra.mxu0 0.0
    %408 = vmatprep.subr.mxu0 0.0
    %409 = vmatpush2.msra.mxu0 0.0
    %410 = vmatprep.subr.mxu0 0.0
    %411 = vmatpush2.msra.mxu0 0.0
    %412 = vmatprep.subr.mxu0 0.0
    %413 = vmatpush2.msra.mxu0 0.0
    %414 = vmatprep.subr.mxu0 0.0
    %415 = vmatpush2.msra.mxu0 0.0
    %416 = vmatprep.subr.mxu0 0.0
    %417 = vmatpush2.msra.mxu0 0.0
    %418 = vmatprep.mubr.f32.mxu0 0.0
    %419 = vmatmul.mubr.f32.gmra.mxu0 %v327
    %v420 = vpop.f32.mrf.mxu0
    %v421 = vadd.f32 %v352, %v420
    %v422 = vpop.f32.mrf.mxu0
    %423 = vdwg.mxu0
    %v424 = vmax.f32 %v421, 0.0
    %v425 = vld [vmem:[%s9] sm:$0xff]
    %v426 = vld [vmem:[%s9 + $0x8] sm:$0xff]
    %v427 = vld [vmem:[%s9 + $0x10] sm:$0xff]
    %v428 = vld [vmem:[%s9 + $0x18] sm:$0xff]
    %v429 = vld [vmem:[%s9 + $0x20] sm:$0xff]
    %v430 = vld [vmem:[%s9 + $0x28] sm:$0xff]
    %v431 = vld [vmem:[%s9 + $0x30] sm:$0xff]
    %v432 = vld [vmem:[%s9 + $0x38] sm:$0xff]
    %v433 = vld [vmem:[%s9 + $0x40] sm:$0xff]
    %v434 = vld [vmem:[%s9 + $0x48] sm:$0xff]
    %v435 = vld [vmem:[%s9 + $0x50] sm:$0xff]
    %v436 = vld [vmem:[%s9 + $0x58] sm:$0xff]
    %v437 = vld [vmem:[%s9 + $0x60] sm:$0xff]
    %v438 = vld [vmem:[%s9 + $0x68] sm:$0xff]
    %v439 = vld [vmem:[%s9 + $0x70] sm:$0xff]
    %v440 = vld [vmem:[%s9 + $0x78] sm:$0xff]
    %v441 = vld [vmem:[%s10] sm:$0x1]
    %v443 = vlaneseq
    %v444 = vshrl.u32 %v443, 7
    %v445 = vsub.s32 0, %v444
    %v446 = vrot.slane %v441, %v445
    %448 = vmatprep.subr.mxu0 0.0
    %449 = vmatpush1.msra.mxu0 %v440
    %450 = vmatprep.subr.mxu0 0.0
    %451 = vmatpush1.msra.mxu0 %v439
    %452 = vmatprep.subr.mxu0 0.0
    %453 = vmatpush1.msra.mxu0 %v438
    %454 = vmatprep.subr.mxu0 0.0
    %455 = vmatpush1.msra.mxu0 %v437
    %456 = vmatprep.subr.mxu0 0.0
    %457 = vmatpush1.msra.mxu0 %v436
    %458 = vmatprep.subr.mxu0 0.0
    %459 = vmatpush1.msra.mxu0 %v435
    %460 = vmatprep.subr.mxu0 0.0
    %461 = vmatpush1.msra.mxu0 %v434
    %462 = vmatprep.subr.mxu0 0.0
    %463 = vmatpush1.msra.mxu0 %v433
    %464 = vmatprep.subr.mxu0 0.0
    %465 = vmatpush1.msra.mxu0 %v432
    %466 = vmatprep.subr.mxu0 0.0
    %467 = vmatpush1.msra.mxu0 %v431
    %468 = vmatprep.subr.mxu0 0.0
    %469 = vmatpush1.msra.mxu0 %v430
    %470 = vmatprep.subr.mxu0 0.0
    %471 = vmatpush1.msra.mxu0 %v429
    %472 = vmatprep.subr.mxu0 0.0
    %473 = vmatpush1.msra.mxu0 %v428
    %474 = vmatprep.subr.mxu0 0.0
    %475 = vmatpush1.msra.mxu0 %v427
    %476 = vmatprep.subr.mxu0 0.0
    %477 = vmatpush1.msra.mxu0 %v426
    %478 = vmatprep.subr.mxu0 0.0
    %479 = vmatpush1.msra.mxu0 %v425
    %480 = vmatprep.subr.mxu0 0.0
    %481 = vmatpush2.msra.mxu0 0.0
    %482 = vmatprep.subr.mxu0 0.0
    %483 = vmatpush2.msra.mxu0 0.0
    %484 = vmatprep.subr.mxu0 0.0
    %485 = vmatpush2.msra.mxu0 0.0
    %486 = vmatprep.subr.mxu0 0.0
    %487 = vmatpush2.msra.mxu0 0.0
    %488 = vmatprep.subr.mxu0 0.0
    %489 = vmatpush2.msra.mxu0 0.0
    %490 = vmatprep.subr.mxu0 0.0
    %491 = vmatpush2.msra.mxu0 0.0
    %492 = vmatprep.subr.mxu0 0.0
    %493 = vmatpush2.msra.mxu0 0.0
    %494 = vmatprep.subr.mxu0 0.0
    %495 = vmatpush2.msra.mxu0 0.0
    %496 = vmatprep.subr.mxu0 0.0
    %497 = vmatpush2.msra.mxu0 0.0
    %498 = vmatprep.subr.mxu0 0.0
    %499 = vmatpush2.msra.mxu0 0.0
    %500 = vmatprep.subr.mxu0 0.0
    %501 = vmatpush2.msra.mxu0 0.0
    %502 = vmatprep.subr.mxu0 0.0
    %503 = vmatpush2.msra.mxu0 0.0
    %504 = vmatprep.subr.mxu0 0.0
    %505 = vmatpush2.msra.mxu0 0.0
    %506 = vmatprep.subr.mxu0 0.0
    %507 = vmatpush2.msra.mxu0 0.0
    %508 = vmatprep.subr.mxu0 0.0
    %509 = vmatpush2.msra.mxu0 0.0
    %510 = vmatprep.subr.mxu0 0.0
    %511 = vmatpush2.msra.mxu0 0.0
    %512 = vmatprep.mubr.f32.mxu0 0.0
    %513 = vmatmul.mubr.f32.gmra.mxu0 %v424
    %v514 = vpop.f32.mrf.mxu0
    %v515 = vadd.f32 %v446, %v514
    %v516 = vpop.f32.mrf.mxu0
    %517 = vdwg.mxu0
    %v518 = vmax.f32 %v515, 0.0
    %v519 = vld [vmem:[%s11] sm:$0xff]
    %v520 = vld [vmem:[%s11 + $0x8] sm:$0xff]
    %v521 = vld [vmem:[%s11 + $0x10] sm:$0xff]
    %v522 = vld [vmem:[%s11 + $0x18] sm:$0xff]
    %v523 = vld [vmem:[%s11 + $0x20] sm:$0xff]
    %v524 = vld [vmem:[%s11 + $0x28] sm:$0xff]
    %v525 = vld [vmem:[%s11 + $0x30] sm:$0xff]
    %v526 = vld [vmem:[%s11 + $0x38] sm:$0xff]
    %v527 = vld [vmem:[%s11 + $0x40] sm:$0xff]
    %v528 = vld [vmem:[%s11 + $0x48] sm:$0xff]
    %v529 = vld [vmem:[%s11 + $0x50] sm:$0xff]
    %v530 = vld [vmem:[%s11 + $0x58] sm:$0xff]
    %v531 = vld [vmem:[%s11 + $0x60] sm:$0xff]
    %v532 = vld [vmem:[%s11 + $0x68] sm:$0xff]
    %v533 = vld [vmem:[%s11 + $0x70] sm:$0xff]
    %v534 = vld [vmem:[%s11 + $0x78] sm:$0xff]
    %v535 = vld [vmem:[%s12] sm:$0x1]
    %v537 = vlaneseq
    %v538 = vshrl.u32 %v537, 7
    %v539 = vsub.s32 0, %v538
    %v540 = vrot.slane %v535, %v539
    %542 = vmatprep.subr.mxu0 0.0
    %543 = vmatpush1.msra.mxu0 %v534
    %544 = vmatprep.subr.mxu0 0.0
    %545 = vmatpush1.msra.mxu0 %v533
    %546 = vmatprep.subr.mxu0 0.0
    %547 = vmatpush1.msra.mxu0 %v532
    %548 = vmatprep.subr.mxu0 0.0
    %549 = vmatpush1.msra.mxu0 %v531
    %550 = vmatprep.subr.mxu0 0.0
    %551 = vmatpush1.msra.mxu0 %v530
    %552 = vmatprep.subr.mxu0 0.0
    %553 = vmatpush1.msra.mxu0 %v529
    %554 = vmatprep.subr.mxu0 0.0
    %555 = vmatpush1.msra.mxu0 %v528
    %556 = vmatprep.subr.mxu0 0.0
    %557 = vmatpush1.msra.mxu0 %v527
    %558 = vmatprep.subr.mxu0 0.0
    %559 = vmatpush1.msra.mxu0 %v526
    %560 = vmatprep.subr.mxu0 0.0
    %561 = vmatpush1.msra.mxu0 %v525
    %562 = vmatprep.subr.mxu0 0.0
    %563 = vmatpush1.msra.mxu0 %v524
    %564 = vmatprep.subr.mxu0 0.0
    %565 = vmatpush1.msra.mxu0 %v523
    %566 = vmatprep.subr.mxu0 0.0
    %567 = vmatpush1.msra.mxu0 %v522
    %568 = vmatprep.subr.mxu0 0.0
    %569 = vmatpush1.msra.mxu0 %v521
    %570 = vmatprep.subr.mxu0 0.0
    %571 = vmatpush1.msra.mxu0 %v520
    %572 = vmatprep.subr.mxu0 0.0
    %573 = vmatpush1.msra.mxu0 %v519
    %574 = vmatprep.subr.mxu0 0.0
    %575 = vmatpush2.msra.mxu0 0.0
    %576 = vmatprep.subr.mxu0 0.0
    %577 = vmatpush2.msra.mxu0 0.0
    %578 = vmatprep.subr.mxu0 0.0
    %579 = vmatpush2.msra.mxu0 0.0
    %580 = vmatprep.subr.mxu0 0.0
    %581 = vmatpush2.msra.mxu0 0.0
    %582 = vmatprep.subr.mxu0 0.0
    %583 = vmatpush2.msra.mxu0 0.0
    %584 = vmatprep.subr.mxu0 0.0
    %585 = vmatpush2.msra.mxu0 0.0
    %586 = vmatprep.subr.mxu0 0.0
    %587 = vmatpush2.msra.mxu0 0.0
    %588 = vmatprep.subr.mxu0 0.0
    %589 = vmatpush2.msra.mxu0 0.0
    %590 = vmatprep.subr.mxu0 0.0
    %591 = vmatpush2.msra.mxu0 0.0
    %592 = vmatprep.subr.mxu0 0.0
    %593 = vmatpush2.msra.mxu0 0.0
    %594 = vmatprep.subr.mxu0 0.0
    %595 = vmatpush2.msra.mxu0 0.0
    %596 = vmatprep.subr.mxu0 0.0
    %597 = vmatpush2.msra.mxu0 0.0
    %598 = vmatprep.subr.mxu0 0.0
    %599 = vmatpush2.msra.mxu0 0.0
    %600 = vmatprep.subr.mxu0 0.0
    %601 = vmatpush2.msra.mxu0 0.0
    %602 = vmatprep.subr.mxu0 0.0
    %603 = vmatpush2.msra.mxu0 0.0
    %604 = vmatprep.subr.mxu0 0.0
    %605 = vmatpush2.msra.mxu0 0.0
    %606 = vmatprep.mubr.f32.mxu0 0.0
    %607 = vmatmul.mubr.f32.gmra.mxu0 %v518
    %v608 = vpop.f32.mrf.mxu0
    %v609 = vadd.f32 %v540, %v608
    %v610 = vpop.f32.mrf.mxu0
    %611 = vdwg.mxu0
    %612 = vst [vmem:[#allocation4] sm:$0xff] %v609
    // Predicated region
    $region54: #{autoencoder_forward.1} parent=1 // pred_check
      _
    $region55: #{autoencoder_forward.1} parent=1 // pred_check_branch
      %614 = sbr.rel (0) target = $region57
    $region56: #{autoencoder_forward.1} parent=1 // pred_region
      %s616 = ssub.s32 128, 128
      %617 = vsyncadd [#allocation3], %s616
      %s619 = sshll.u32 [#allocation2], 4
      %s620 = int_to_ptr.vmem [resolvable:$true] %s619
      %622 = dma.vmem_to_hbm [thread:$0]  %s620, 128, %s13, [#allocation3]
    $region57: #{autoencoder_forward.1} parent=1 // pred_fallthru
      _
    // Predicated region
    $region58: #{autoencoder_forward.1} parent=1 // pred_check
      _
    $region59: #{autoencoder_forward.1} parent=1 // pred_check_branch
      %624 = sbr.rel (0) target = $region61
    $region60: #{autoencoder_forward.1} parent=1 // pred_region
      %s626 = ssub.s32 128, 128
      %627 = vsyncadd [#allocation5], %s626
      %s629 = sshll.u32 [#allocation4], 4
      %s630 = int_to_ptr.vmem [resolvable:$true] %s629
      %632 = dma.vmem_to_hbm [thread:$0]  %s630, 128, %s14, [#allocation5]
    $region61: #{autoencoder_forward.1} parent=1 // pred_fallthru
      _
    // Predicated region
    $region62: #{autoencoder_forward.1} parent=1 // pred_check
      _
    $region63: #{autoencoder_forward.1} parent=1 // pred_check_branch
      %634 = sbr.rel (0) target = $region65
    $region64: #{autoencoder_forward.1} parent=1 // pred_region
      %635 = dma.done [#allocation3], 128
    $region65: #{autoencoder_forward.1} parent=1 // pred_fallthru
      _
    // Predicated region
    $region66: #{autoencoder_forward.1} parent=1 // pred_check
      _
    $region67: #{autoencoder_forward.1} parent=1 // pred_check_branch
      %637 = sbr.rel (0) target = $region69
    $region68: #{autoencoder_forward.1} parent=1 // pred_region
      %638 = dma.done [#allocation5], 128
    $region69: #{autoencoder_forward.1} parent=1 // pred_fallthru
      _
    %639 = vsyncpa [#allocation3], 1
    %640 = vsyncpa [#allocation5], 1

</llo_original>
